<compile_context>
chip_gen: v7x
topology: tpu7x:2x2x1
jax: 0.10.0
libtpu: 0.0.40
codegen_flags: <defaults>
</compile_context>

<pallas_src>
import functools

import jax
import jax.numpy as jnp
from jax import lax
from jax.experimental import pallas as pl
from jax.experimental.pallas import tpu as pltpu

_SMOOTH = 1e-10
_LANES = 128
_MAX_TILE_ROWS = 1024   # ~0.5 MiB per f32 input block; >=512 rows already ~85% of HBM roofline
_NUM_SPLITS = 2         # leading parallel axis -> sharded across TensorCores on v7x


def _bce_partial_kernel(p_ref, t_ref, o_ref, acc_ref, *,
                        n_elems, tile_rows, tiles_per_split, num_tiles, needs_mask):
    c = pl.program_id(0)   # core split (parallel)
    t = pl.program_id(1)   # row-tile within split (sequential reduction)

    @pl.when(t == 0)
    def _():
        acc_ref[...] = jnp.zeros_like(acc_ref)

    lt = c * tiles_per_split + t   # linear row-tile index

    @pl.when(lt < num_tiles)       # skip padded (clamped) iterations of a ragged split
    def _():
        # Cast in-kernel so the 1e-10 smoothing survives even for bf16 inputs.
        p = p_ref[...].astype(jnp.float32)
        tgt = t_ref[...].astype(jnp.float32)
        ce = -(tgt * jnp.log(p + _SMOOTH) + (1.0 - tgt) * jnp.log(1.0 - p + _SMOOTH))
        if needs_mask:
            # Mask out wrapper padding and garbage from a partial trailing block.
            row = lax.broadcasted_iota(jnp.int32, ce.shape, 0) + lt * tile_rows
            lane = lax.broadcasted_iota(jnp.int32, ce.shape, 1)
            flat = row * _LANES + lane
            ce = jnp.where(flat < n_elems, ce, 0.0)
        # Lane-wide accumulation: sublane reduce + VPU add; cross-lane reduce deferred to wrapper.
        acc_ref[...] += jnp.sum(ce, axis=0, keepdims=True)

    @pl.when(t == pl.num_programs(1) - 1)
    def _():
        o_ref[...] = acc_ref[...]


def boundary_loss(preds, targets):
    """Mean binary cross-entropy, matching boundaryLoss.forward semantics."""
    assert preds.shape == targets.shape

    n_elems = preds.size
    p_flat = preds.reshape(-1)
    t_flat = targets.reshape(-1)

    # Minimal padding: only up to the next multiple of 8*128 so the 2D reshape/tiling is legal.
    # Pad values are irrelevant (masked in-kernel); 0.5 keeps log() finite.
    min_chunk = 8 * _LANES
    padded = ((n_elems + min_chunk - 1) // min_chunk) * min_chunk
    pad = padded - n_elems
    if pad > 0:
        p_flat = jnp.pad(p_flat, (0, pad), constant_values=0.5)
        t_flat = jnp.pad(t_flat, (0, pad), constant_values=0.5)

    rows = padded // _LANES
    p2d = p_flat.reshape(rows, _LANES)
    t2d = t_flat.reshape(rows, _LANES)

    tile_rows = min(_MAX_TILE_ROWS, rows)
    num_tiles = -(-rows // tile_rows)
    num_splits = _NUM_SPLITS if num_tiles >= _NUM_SPLITS else 1
    tiles_per_split = -(-num_tiles // num_splits)

    # Mask needed if we padded the flat array or the trailing block is partial (OOB garbage).
    needs_mask = (pad > 0) or (num_tiles * tile_rows != rows)

    kernel = functools.partial(
        _bce_partial_kernel,
        n_elems=n_elems,
        tile_rows=tile_rows,
        tiles_per_split=tiles_per_split,
        num_tiles=num_tiles,
        needs_mask=needs_mask,
    )

    def in_map(c, t):
        # Clamp so a ragged split never DMAs out of bounds; the kernel skips those iterations.
        return (jnp.minimum(c * tiles_per_split + t, num_tiles - 1), 0)

    partials = pl.pallas_call(
        kernel,
        out_shape=jax.ShapeDtypeStruct((num_splits, _LANES), jnp.float32),
        grid_spec=pltpu.PrefetchScalarGridSpec(
            num_scalar_prefetch=0,
            grid=(num_splits, tiles_per_split),
            in_specs=[
                pl.BlockSpec((tile_rows, _LANES), in_map),
                pl.BlockSpec((tile_rows, _LANES), in_map),
            ],
            out_specs=pl.BlockSpec((1, _LANES), lambda c, t: (c, 0)),
            scratch_shapes=[pltpu.VMEM((1, _LANES), jnp.float32)],
        ),
        compiler_params=pltpu.CompilerParams(
            dimension_semantics=("parallel", "arbitrary"),
        ),
    )(p2d, t2d)

    # Final cross-lane / cross-split reduction + mean (single tiny XLA reduce).
    return jnp.sum(partials) * (1.0 / float(n_elems))


def boundary_loss_ref(preds, targets):
    ce = -(targets * jnp.log(preds + _SMOOTH)
           + (1.0 - targets) * jnp.log(1.0 - preds + _SMOOTH))
    return jnp.mean(ce)


if __name__ == "__main__":
    key = jax.random.PRNGKey(0)

    # Primary small NCHW case consistent with the module.
    k1, k2 = jax.random.split(key)
    shape = (2, 4, 16, 16)
    preds = jax.nn.sigmoid(jax.random.normal(k1, shape, dtype=jnp.float32))
    targets = (jax.random.uniform(k2, shape) > 0.5).astype(jnp.float32)

    loss = boundary_loss(preds, targets)
    loss = jax.block_until_ready(loss)
    ref = boundary_loss_ref(preds, targets)
    assert jnp.allclose(loss, ref, rtol=1e-5, atol=1e-6), (loss, ref)

    # Secondary: odd sizes -> exercises minimal padding + in-kernel tail masking.
    k3, k4 = jax.random.split(k2)
    shape2 = (2, 3, 37, 29)
    preds2 = jax.nn.sigmoid(jax.random.normal(k3, shape2, dtype=jnp.float32))
    targets2 = (jax.random.uniform(k4, shape2) > 0.5).astype(jnp.float32)
    loss2 = jax.block_until_ready(boundary_loss(preds2, targets2))
    ref2 = boundary_loss_ref(preds2, targets2)
    assert jnp.allclose(loss2, ref2, rtol=1e-5, atol=1e-6), (loss2, ref2)

    # Tertiary: multi-tile case -> exercises the 2-way core split with a ragged (clamped) tile.
    k5, k6 = jax.random.split(k4)
    shape3 = (1, 4, 256, 384)
    preds3 = jax.nn.sigmoid(jax.random.normal(k5, shape3, dtype=jnp.float32))
    targets3 = (jax.random.uniform(k6, shape3) > 0.5).astype(jnp.float32)
    loss3 = jax.block_until_ready(boundary_loss(preds3, targets3))
    ref3 = boundary_loss_ref(preds3, targets3)
    assert jnp.allclose(loss3, ref3, rtol=1e-4, atol=1e-5), (loss3, ref3)

    print("KERNEL_OK")
</pallas_src>

<mosaic_0001>
module attributes {stable_mosaic.version = 11 : i64} {
  func.func @_bce_partial_kernel(%arg0: i32, %arg1: i32, %arg2: memref<16x128xf32, #tpu.memory_space<vmem>>, %arg3: memref<16x128xf32, #tpu.memory_space<vmem>>, %arg4: memref<1x128xf32, #tpu.memory_space<vmem>>, %arg5: memref<1x128xf32, #tpu.memory_space<vmem>>) attributes {dimension_semantics = [#tpu.dimension_semantics<parallel>, #tpu.dimension_semantics<arbitrary>], iteration_bounds = array<i64: 1, 1>, scalar_prefetch = 0 : i64, scratch_operands = 1 : i64, tpu.core_type = #tpu.core_type<tc>, window_params = [{transform_indices = @transform_0, window_bounds = array<i64: 16, 128>}, {transform_indices = @transform_1, window_bounds = array<i64: 16, 128>}, {transform_indices = @transform_2, window_bounds = array<i64: 1, 128>}]} {
    %c0_i32 = arith.constant 0 : i32
    %0 = arith.cmpi eq, %arg1, %c0_i32 : i32
    %1 = arith.extui %0 : i1 to i32
    %c0_i32_0 = arith.constant 0 : i32
    %2 = arith.cmpi ne, %1, %c0_i32_0 : i32
    scf.if %2 {
      %cst = arith.constant 0.000000e+00 : f32
      %11 = vector.broadcast %cst : f32 to vector<1x128xf32>
      %c0 = arith.constant 0 : index
      %c0_5 = arith.constant 0 : index
      %12 = vector.load %arg5[%c0, %c0_5] : memref<1x128xf32, #tpu.memory_space<vmem>>, vector<1x128xf32>
      tpu.vector_store %arg5[%c0, %c0_5], %11 {strides = array<i32>} : memref<1x128xf32, #tpu.memory_space<vmem>>, vector<1x128xf32>,
    } else {
    }
    %c1_i32 = arith.constant 1 : i32
    %3 = arith.muli %arg0, %c1_i32 : i32
    %4 = arith.addi %3, %arg1 : i32
    %c1_i32_1 = arith.constant 1 : i32
    %5 = arith.cmpi slt, %4, %c1_i32_1 : i32
    %6 = arith.extui %5 : i1 to i32
    %c0_i32_2 = arith.constant 0 : i32
    %7 = arith.cmpi ne, %6, %c0_i32_2 : i32
    scf.if %7 {
      %c0 = arith.constant 0 : index
      %c0_5 = arith.constant 0 : index
      %11 = vector.load %arg2[%c0, %c0_5] : memref<16x128xf32, #tpu.memory_space<vmem>>, vector<16x128xf32>
      %c0_6 = arith.constant 0 : index
      %c0_7 = arith.constant 0 : index
      %12 = vector.load %arg3[%c0_6, %c0_7] : memref<16x128xf32, #tpu.memory_space<vmem>>, vector<16x128xf32>
      %cst = arith.constant 1.000000e-10 : f32
      %13 = vector.broadcast %cst : f32 to vector<16x128xf32>
      %14 = arith.addf %11, %13 : vector<16x128xf32>
      %15 = math.log %14 : vector<16x128xf32>
      %16 = arith.mulf %12, %15 : vector<16x128xf32>
      %cst_8 = arith.constant 1.000000e+00 : f32
      %17 = vector.broadcast %cst_8 : f32 to vector<16x128xf32>
      %18 = arith.subf %17, %12 : vector<16x128xf32>
      %cst_9 = arith.constant 1.000000e+00 : f32
      %19 = vector.broadcast %cst_9 : f32 to vector<16x128xf32>
      %20 = arith.subf %19, %11 : vector<16x128xf32>
      %cst_10 = arith.constant 1.000000e-10 : f32
      %21 = vector.broadcast %cst_10 : f32 to vector<16x128xf32>
      %22 = arith.addf %20, %21 : vector<16x128xf32>
      %23 = math.log %22 : vector<16x128xf32>
      %24 = arith.mulf %18, %23 : vector<16x128xf32>
      %25 = arith.addf %16, %24 : vector<16x128xf32>
      %cst_11 = arith.constant 0.000000e+00 : f32
      %26 = vector.broadcast %cst_11 : f32 to vector<16x128xf32>
      %27 = arith.subf %26, %25 : vector<16x128xf32>
      %c0_12 = arith.constant 0 : index
      %c0_13 = arith.constant 0 : index
      %28 = vector.load %arg5[%c0_12, %c0_13] : memref<1x128xf32, #tpu.memory_space<vmem>>, vector<1x128xf32>
      %cst_14 = arith.constant dense<0.000000e+00> : vector<128xf32>
      %29 = vector.multi_reduction <add>, %27, %cst_14 [0] : vector<16x128xf32> to vector<128xf32>
      %30 = vector.shape_cast %29 : vector<128xf32> to vector<1x128xf32>
      %31 = arith.addf %28, %30 : vector<1x128xf32>
      %c0_15 = arith.constant 0 : index
      %c0_16 = arith.constant 0 : index
      %32 = vector.load %arg5[%c0_15, %c0_16] : memref<1x128xf32, #tpu.memory_space<vmem>>, vector<1x128xf32>
      tpu.vector_store %arg5[%c0_15, %c0_16], %31 {strides = array<i32>} : memref<1x128xf32, #tpu.memory_space<vmem>>, vector<1x128xf32>,
    } else {
    }
    %c0_i32_3 = arith.constant 0 : i32
    %8 = arith.cmpi eq, %arg1, %c0_i32_3 : i32
    %9 = arith.extui %8 : i1 to i32
    %c0_i32_4 = arith.constant 0 : i32
    %10 = arith.cmpi ne, %9, %c0_i32_4 : i32
    scf.if %10 {
      %c0 = arith.constant 0 : index
      %c0_5 = arith.constant 0 : index
      %11 = vector.load %arg5[%c0, %c0_5] : memref<1x128xf32, #tpu.memory_space<vmem>>, vector<1x128xf32>
      %c0_6 = arith.constant 0 : index
      %c0_7 = arith.constant 0 : index
      %12 = vector.load %arg4[%c0_6, %c0_7] : memref<1x128xf32, #tpu.memory_space<vmem>>, vector<1x128xf32>
      tpu.vector_store %arg4[%c0_6, %c0_7], %11 {strides = array<i32>} : memref<1x128xf32, #tpu.memory_space<vmem>>, vector<1x128xf32>,
    } else {
    }
    return
  }
  func.func @transform_0(%arg0: i32, %arg1: i32) -> (i32, i32) {
    %c1_i32 = arith.constant 1 : i32
    %0 = arith.muli %arg0, %c1_i32 : i32
    %1 = arith.addi %0, %arg1 : i32
    %c0_i32 = arith.constant 0 : i32
    %2 = arith.minsi %1, %c0_i32 : i32
    %c0_i32_0 = arith.constant 0 : i32
    %c0_i32_1 = arith.constant 0 : i32
    return %2, %c0_i32_0 : i32, i32
  }
  func.func @transform_1(%arg0: i32, %arg1: i32) -> (i32, i32) {
    %c1_i32 = arith.constant 1 : i32
    %0 = arith.muli %arg0, %c1_i32 : i32
    %1 = arith.addi %0, %arg1 : i32
    %c0_i32 = arith.constant 0 : i32
    %2 = arith.minsi %1, %c0_i32 : i32
    %c0_i32_0 = arith.constant 0 : i32
    %c0_i32_1 = arith.constant 0 : i32
    return %2, %c0_i32_0 : i32, i32
  }
  func.func @transform_2(%arg0: i32, %arg1: i32) -> (i32, i32) {
    %c0_i32 = arith.constant 0 : i32
    %c0_i32_0 = arith.constant 0 : i32
    return %arg0, %c0_i32 : i32, i32
  }
}

</mosaic_0001>

<llo_original>
// kernel: tpu_custom_call.1
$region0: #{tpu_custom_call.1}
  #allocation0 [shape = 'u32[]', space=smem, size = 0x4, offset = 0x4, fixed_abs, tag = 'smem constant byte address 0x4 - core index']
  #allocation1 [shape = 'u32[144,128]{1,0:T(1,128)}', space=vmem, size = 0x12000, scoped, tag = 'internal scratch']
  #allocation2 [shape = 'f32[1,128]{1,0:T(1,128)}', space=vmem, size = 0x200, scoped, tag = 'scratch operand']
  %s0 = inlined_call_operand.hbm [shape: f32[16,128], index: 0, kind: input, shape index: {}]
  %s1 = inlined_call_operand.hbm [shape: f32[16,128], index: 1, kind: input, shape index: {}]
  %s2 = inlined_call_operand.hbm [shape: f32[1,128], index: 2, kind: output, shape index: {}]
  %s3 = sld [smem:[#allocation0]]
  $region38: #{tpu_custom_call.1} parent=0
    _
  %s5 = ssub.s32 1, %s3
  %s6 = scalar_select 0, %s5, %s3
  $region1: #{tpu_custom_call.1} parent=0
    #allocation3 [shape = 'u8[8192]{0}', space=vmem, size = 0x2000, scoped, tag = 'input window, operand 0, single buffered']
    #allocation4 [shape = 's32[1]{0}', space=sflag, size = 0x4, scoped, tag = 'scoped memory for tpu_custom_call.1']
    #allocation5 [shape = 's32[1]{0}', space=sflag, size = 0x4, scoped, tag = 'scoped memory for tpu_custom_call.1']
    #allocation6 [shape = 'u8[8192]{0}', space=vmem, size = 0x2000, scoped, tag = 'input window, operand 1, single buffered']
    #allocation7 [shape = 's32[1]{0}', space=sflag, size = 0x4, scoped, tag = 'scoped memory for tpu_custom_call.1']
    #allocation8 [shape = 'u8[512]{0}', space=vmem, size = 0x400, scoped, tag = 'output window, operand 0, single buffered']
    %7 = vsyncpa [#allocation4], 0
    %8 = vsyncpa [#allocation7], 0
    %9 = vsyncpa [#allocation5], 0
    // Predicated region
    $region2: #{tpu_custom_call.1} parent=1 // pred_check
      _
    $region3: #{tpu_custom_call.1} parent=1 // pred_check_branch
      %11 = sbr.rel (0) target = $region5
    $region4: #{tpu_custom_call.1} parent=1 // pred_region
      %s12 = sadd.s32 0, 0
      %p13 = scmp.lt.s32.totalorder %s12, 0
      %s14 = scalar_select %p13, %s12, 0
      %s15 = smul.u32 2, %s14
      %s17 = ssub.s32 256, 256
      %18 = vsyncadd [#allocation4], %s17
      %s19 = smul.addr %s15, 128
      %s20 = scalar_lea.hbm %s0, %s19
      %s21 = sshll.u32 [#allocation3], 4
      %s22 = int_to_ptr.vmem [resolvable:$true] %s21
      %27 = dma.hbm_to_vmem [thread:$0]  %s20, 256, %s22, [#allocation4], 128, 128, 8
    $region5: #{tpu_custom_call.1} parent=1 // pred_fallthru
      _
    // Predicated region
    $region6: #{tpu_custom_call.1} parent=1 // pred_check
      _
    $region7: #{tpu_custom_call.1} parent=1 // pred_check_branch
      %29 = sbr.rel (0) target = $region9
    $region8: #{tpu_custom_call.1} parent=1 // pred_region
      %s30 = sadd.s32 0, 0
      %p31 = scmp.lt.s32.totalorder %s30, 0
      %s32 = scalar_select %p31, %s30, 0
      %s33 = smul.u32 2, %s32
      %s35 = ssub.s32 256, 256
      %36 = vsyncadd [#allocation7], %s35
      %s37 = smul.addr %s33, 128
      %s38 = scalar_lea.hbm %s1, %s37
      %s39 = sshll.u32 [#allocation6], 4
      %s40 = int_to_ptr.vmem [resolvable:$true] %s39
      %45 = dma.hbm_to_vmem [thread:$0]  %s38, 256, %s40, [#allocation7], 128, 128, 8
    $region9: #{tpu_custom_call.1} parent=1 // pred_fallthru
      _
    // Predicated region
    $region10: #{tpu_custom_call.1} parent=1 // pred_check
      _
    $region11: #{tpu_custom_call.1} parent=1 // pred_check_branch
      %47 = sbr.rel (0) target = $region13
    $region12: #{tpu_custom_call.1} parent=1 // pred_region
      %48 = dma.done [#allocation4], 256
    $region13: #{tpu_custom_call.1} parent=1 // pred_fallthru
      _
    // Predicated region
    $region14: #{tpu_custom_call.1} parent=1 // pred_check
      _
    $region15: #{tpu_custom_call.1} parent=1 // pred_check_branch
      %50 = sbr.rel (0) target = $region17
    $region16: #{tpu_custom_call.1} parent=1 // pred_region
      %51 = dma.done [#allocation7], 256
    $region17: #{tpu_custom_call.1} parent=1 // pred_fallthru
      _
    %s52 = sadd.s32 0, 0
    %p53 = scmp.lt.s32.totalorder %s52, 0
    %s54 = scalar_select %p53, %s52, 0
    %s55 = smul.u32 2, %s54
    %s56 = sadd.s32 0, 0
    %p57 = scmp.lt.s32.totalorder %s56, 0
    %s58 = scalar_select %p57, %s56, 0
    %s59 = smul.u32 2, %s58
    %p60 = scmp.eq.s32.totalorder 0, 0
    // Predicated region
    $region18: #{tpu_custom_call.1} parent=1 // pred_check
      %p61 = pneg %p60
    $region19: #{tpu_custom_call.1} parent=1 // pred_check_branch
      %63 = sbr.rel (%p61) target = $region21
    $region20: #{tpu_custom_call.1} parent=1 // pred_region
      %64 = vst [vmem:[#allocation2] sm:$0x1] 0.0
    $region21: #{tpu_custom_call.1} parent=1 // pred_fallthru
      _
    %s65 = sadd.s32 0, 0
    %p66 = scmp.lt.s32.totalorder %s65, 1
    // Predicated region
    $region22: #{tpu_custom_call.1} parent=1 // pred_check
      %p67 = pneg %p66
    $region23: #{tpu_custom_call.1} parent=1 // pred_check_branch
      %69 = sbr.rel (%p67) target = $region25
    $region24: #{tpu_custom_call.1} parent=1 // pred_region
      %v70 = vld [vmem:[#allocation3] sm:$0xff]
      %v71 = vld [vmem:[#allocation3 + $0x8] sm:$0xff]
      %v72 = vld [vmem:[#allocation6] sm:$0xff]
      %v73 = vld [vmem:[#allocation6 + $0x8] sm:$0xff]
      %v74 = vadd.f32 %v70, 1e-10
      %v75 = vadd.f32 %v71, 1e-10
      %v76 = vlog2.pop %v74
      %v77 = vmul.f32 %v76, 0.6931472
      %v78 = vlog2.pop %v75
      %v79 = vmul.f32 %v78, 0.6931472
      %v80 = vmul.f32 %v72, %v77
      %v81 = vmul.f32 %v73, %v79
      %v82 = vsub.f32 1.0, %v72
      %v83 = vsub.f32 1.0, %v73
      %v84 = vsub.f32 1.0, %v70
      %v85 = vsub.f32 1.0, %v71
      %v86 = vadd.f32 %v84, 1e-10
      %v87 = vadd.f32 %v85, 1e-10
      %v88 = vlog2.pop %v86
      %v89 = vmul.f32 %v88, 0.6931472
      %v90 = vlog2.pop %v87
      %v91 = vmul.f32 %v90, 0.6931472
      %v92 = vmul.f32 %v82, %v89
      %v93 = vmul.f32 %v83, %v91
      %v94 = vadd.f32 %v80, %v92
      %v95 = vadd.f32 %v81, %v93
      %v96 = vsub.f32 0.0, %v94
      %v97 = vsub.f32 0.0, %v95
      %v98 = vld [vmem:[#allocation2] sm:$0x1]
      %v99 = vadd.f32 %v96, %v97
      %v100 = vrot.slane %v99, 4
      %v101 = vadd.f32 %v99, %v100
      %v102 = vrot.slane %v101, 2
      %v103 = vadd.f32 %v101, %v102
      %v104 = vrot.slane %v103, 1
      %v105 = vadd.f32 %v103, %v104
      %v106 = vadd.f32 %v98, %v105
      %107 = vst [vmem:[#allocation2] sm:$0x1] %v106
    $region25: #{tpu_custom_call.1} parent=1 // pred_fallthru
      _
    // Predicated region
    $region26: #{tpu_custom_call.1} parent=1 // pred_check
      %p108 = pneg %p60
    $region27: #{tpu_custom_call.1} parent=1 // pred_check_branch
      %110 = sbr.rel (%p108) target = $region29
    $region28: #{tpu_custom_call.1} parent=1 // pred_region
      %v111 = vld [vmem:[#allocation2] sm:$0x1]
      %112 = vst [vmem:[#allocation8] sm:$0x1] %v111
    $region29: #{tpu_custom_call.1} parent=1 // pred_fallthru
      _
    // Predicated region
    $region30: #{tpu_custom_call.1} parent=1 // pred_check
      _
    $region31: #{tpu_custom_call.1} parent=1 // pred_check_branch
      %114 = sbr.rel (0) target = $region33
    $region32: #{tpu_custom_call.1} parent=1 // pred_region
      %s116 = ssub.s32 16, 16
      %117 = vsyncadd [#allocation5], %s116
      %s119 = sshll.u32 [#allocation8], 4
      %s120 = int_to_ptr.vmem [resolvable:$true] %s119
      %122 = dma.vmem_to_hbm [thread:$0]  %s120, 16, %s2, [#allocation5]
    $region33: #{tpu_custom_call.1} parent=1 // pred_fallthru
      _
    // Predicated region
    $region34: #{tpu_custom_call.1} parent=1 // pred_check
      _
    $region35: #{tpu_custom_call.1} parent=1 // pred_check_branch
      %124 = sbr.rel (0) target = $region37
    $region36: #{tpu_custom_call.1} parent=1 // pred_region
      %125 = dma.done [#allocation5], 16
    $region37: #{tpu_custom_call.1} parent=1 // pred_fallthru
      _
    %126 = vsyncpa [#allocation4], 1
    %127 = vsyncpa [#allocation7], 1
    %128 = vsyncpa [#allocation5], 1

</llo_original>
